<compile_context>
chip_gen: v5e
topology: v5e:2x2
jax: 0.10.0
libtpu: 0.0.40
codegen_flags: <defaults>
</compile_context>

<pallas_src>
import jax
import jax.numpy as jnp
from jax.experimental import pallas as pl
from jax.experimental.pallas import tpu as pltpu

LANE = 128
DEFAULT_TILE_ROWS = 512   # 512 * 128 * 4 B = 256 KiB per input per buffer


def _round_up(a, b):
    return (a + b - 1) // b * b


def _choose_tiling(n_elems, tile_rows):
    """Rows of 128 lanes; tile rows a multiple of 16 (f32 & bf16 friendly)."""
    rows = -(-n_elems // LANE)
    tr = min(_round_up(tile_rows, 16), _round_up(rows, 16))
    n_tiles = -(-rows // tr)
    rows_padded = n_tiles * tr
    return tr, n_tiles, rows_padded


def _pad_last(x, rows_padded):
    """Zero-pad the last axis of x up to rows_padded * LANE elements."""
    pad = rows_padded * LANE - x.shape[-1]
    if pad:
        widths = [(0, 0)] * (x.ndim - 1) + [(0, pad)]
        x = jnp.pad(x, widths)
    return x


# ---------------------------------------------------------------------------
# MSE: sum((x - y)^2) accumulated over a 1-D grid of (TR, 128) tiles, divided
# by the true element count in the wrapper.
# ---------------------------------------------------------------------------
def _mse_sum_kernel(x_ref, y_ref, o_ref):
    i = pl.program_id(0)

    @pl.when(i == 0)
    def _init():
        o_ref[0] = jnp.float32(0.0)

    d = x_ref[...].astype(jnp.float32) - y_ref[...].astype(jnp.float32)
    o_ref[0] += jnp.sum(d * d)


def mse_loss_pallas(x, y, tile_rows=DEFAULT_TILE_ROWS):
    assert x.shape == y.shape
    total = int(x.size)
    tr, n_tiles, rows_p = _choose_tiling(total, tile_rows)
    x2 = _pad_last(jnp.ravel(x), rows_p).reshape(rows_p, LANE)
    y2 = _pad_last(jnp.ravel(y), rows_p).reshape(rows_p, LANE)

    sq_sum = pl.pallas_call(
        _mse_sum_kernel,
        out_shape=jax.ShapeDtypeStruct((1,), jnp.float32),
        grid_spec=pltpu.PrefetchScalarGridSpec(
            num_scalar_prefetch=0,
            grid=(n_tiles,),
            in_specs=[
                pl.BlockSpec((tr, LANE), lambda i: (i, 0)),
                pl.BlockSpec((tr, LANE), lambda i: (i, 0)),
            ],
            out_specs=pl.BlockSpec(memory_space=pltpu.MemorySpace.SMEM),
        ),
        compiler_params=pltpu.CompilerParams(
            dimension_semantics=("arbitrary",)),
    )(x2, y2)
    # Divide by the UN-padded element count (padding contributes 0 to the sum).
    return sq_sum[0] / jnp.float32(total)


# ---------------------------------------------------------------------------
# Normalized cross-correlation (reduction='mean'):
# Streaming per-batch moments Sx, Sy, Sxy, Sxx, Syy over (TR, 128) tiles of
# each row's flattened features; the closed-form finalize
#   row_sum_ncc = (Sxy - Sx*Sy/N + eps) / (sqrt((Sxx-Sx^2/N)(Syy-Sy^2/N)) + eps)
#   loss        = (1 - mean_b(row_sum_ncc)) * -1
# runs as a handful of scalar ops in the wrapper.  (Adding eps once to the
# numerator row-sum == summing N copies of eps/N in the reference.)
# ---------------------------------------------------------------------------
def _ncc_moment_kernel(x_ref, y_ref, mom_ref):
    b = pl.program_id(0)
    t = pl.program_id(1)

    @pl.when(t == 0)
    def _init():
        for k in range(5):
            mom_ref[b, k] = jnp.float32(0.0)

    x = x_ref[...].astype(jnp.float32)   # (TR, 128), vreg-dense
    y = y_ref[...].astype(jnp.float32)
    mom_ref[b, 0] += jnp.sum(x)
    mom_ref[b, 1] += jnp.sum(y)
    mom_ref[b, 2] += jnp.sum(x * y)
    mom_ref[b, 3] += jnp.sum(x * x)
    mom_ref[b, 4] += jnp.sum(y * y)


def crosscorr_loss_pallas(x, y, eps=1e-08, tile_rows=DEFAULT_TILE_ROWS):
    assert x.shape == y.shape
    b = x.shape[0]
    n = int(x.size) // b                      # torch's x.view(b, -1) width
    tr, n_tiles, rows_p = _choose_tiling(n, tile_rows)
    x2 = _pad_last(x.reshape(b, n), rows_p).reshape(b, rows_p, LANE)
    y2 = _pad_last(y.reshape(b, n), rows_p).reshape(b, rows_p, LANE)

    moments = pl.pallas_call(
        _ncc_moment_kernel,
        out_shape=jax.ShapeDtypeStruct((b, 5), jnp.float32),
        grid_spec=pltpu.PrefetchScalarGridSpec(
            num_scalar_prefetch=0,
            grid=(b, n_tiles),
            in_specs=[
                pl.BlockSpec((None, tr, LANE), lambda bi, ti: (bi, ti, 0)),
                pl.BlockSpec((None, tr, LANE), lambda bi, ti: (bi, ti, 0)),
            ],
            out_specs=pl.BlockSpec(memory_space=pltpu.MemorySpace.SMEM),
        ),
        compiler_params=pltpu.CompilerParams(
            dimension_semantics=("arbitrary", "arbitrary")),
    )(x2, y2)

    nf = jnp.float32(n)
    sx, sy, sxy, sxx, syy = (moments[:, k] for k in range(5))
    sxy_c = sxy - sx * sy / nf
    sxx_c = sxx - sx * sx / nf
    syy_c = syy - sy * sy / nf
    row = (sxy_c + jnp.float32(eps)) / (jnp.sqrt(sxx_c * syy_c) + jnp.float32(eps))
    gc = jnp.mean(row)                        # mean over batch of per-row sums
    return (1.0 - gc) * -1.0                  # NormalizedCrossCorrelationLoss


# ---------------------------------------------------------------------------
# LossModule equivalent
# ---------------------------------------------------------------------------
def loss_module_forward(true, pred, loss_term="MSE"):
    # torch's .squeeze(-1): drop trailing dim only if it is size 1
    if true.shape[-1] == 1:
        true = jnp.squeeze(true, axis=-1)
    if pred.shape[-1] == 1:
        pred = jnp.squeeze(pred, axis=-1)

    if loss_term == "MSE":
        return mse_loss_pallas(true, pred)
    elif loss_term == "CROSSCORR":
        return crosscorr_loss_pallas(true, pred)
    elif loss_term in ("STFT", "M-STFT", "PHASE"):
        # TODO(synk): torch.stft (FFT) has no Pallas TPU primitive; STFT-based
        # losses are not implemented here.
        raise NotImplementedError(f"{loss_term} loss requires an FFT")
    else:
        raise ValueError("Please choose a valid loss function")


if __name__ == "__main__":
    key = jax.random.PRNGKey(0)
    k1, k2 = jax.random.split(key)
    # (B, T, 1) audio-style inputs, consistent with squeeze(-1) in forward()
    true = jax.random.normal(k1, (2, 1024, 1), dtype=jnp.float32)
    pred = jax.random.normal(k2, (2, 1024, 1), dtype=jnp.float32)

    # default path: MSE
    mse = loss_module_forward(true, pred, loss_term="MSE")
    # cross-correlation path
    cc = loss_module_forward(true, pred, loss_term="CROSSCORR")
    jax.block_until_ready((mse, cc))

    # reference checks (plain JAX, mirroring the torch semantics)
    t2 = jnp.squeeze(true, -1)
    p2 = jnp.squeeze(pred, -1)
    mse_ref = jnp.mean((t2 - p2) ** 2)
    bsz = t2.shape[0]
    xf = t2.reshape(bsz, -1)
    yf = p2.reshape(bsz, -1)
    xc = xf - xf.mean(1, keepdims=True)
    yc = yf - yf.mean(1, keepdims=True)
    ncc = (xc * yc + 1e-08 / xf.shape[1]) / (
        jnp.sqrt((xc * xc).sum(1, keepdims=True) * (yc * yc).sum(1, keepdims=True)) + 1e-08
    )
    cc_ref = (1.0 - jnp.mean(jnp.sum(ncc, axis=1))) * -1.0

    assert jnp.allclose(mse, mse_ref, rtol=1e-5, atol=1e-6), (mse, mse_ref)
    assert jnp.allclose(cc, cc_ref, rtol=1e-4, atol=1e-5), (cc, cc_ref)

    print("KERNEL_OK")
</pallas_src>

<mosaic_0001>
module attributes {stable_mosaic.version = 11 : i64} {
  func.func @_mse_sum_kernel(%arg0: i32, %arg1: memref<16x128xf32, #tpu.memory_space<vmem>>, %arg2: memref<16x128xf32, #tpu.memory_space<vmem>>, %arg3: memref<1xf32, #tpu.memory_space<smem>>) attributes {dimension_semantics = [#tpu.dimension_semantics<arbitrary>], iteration_bounds = array<i64: 1>, scalar_prefetch = 0 : i64, scratch_operands = 0 : i64, tpu.core_type = #tpu.core_type<tc>, window_params = [{transform_indices = @transform_0, window_bounds = array<i64: 16, 128>}, {transform_indices = @transform_1, window_bounds = array<i64: 16, 128>}, {transform_indices = @transform_2, window_bounds = array<i64: 1>}]} {
    %c0_i32 = arith.constant 0 : i32
    %0 = arith.cmpi eq, %arg0, %c0_i32 : i32
    %1 = arith.extui %0 : i1 to i32
    %c0_i32_0 = arith.constant 0 : i32
    %2 = arith.cmpi ne, %1, %c0_i32_0 : i32
    scf.if %2 {
      %cst_6 = arith.constant 0.000000e+00 : f32
      %c0_7 = arith.constant 0 : index
      %14 = memref.load %arg3[%c0_7] : memref<1xf32, #tpu.memory_space<smem>>
      memref.store %cst_6, %arg3[%c0_7] : memref<1xf32, #tpu.memory_space<smem>>
    } else {
    }
    %c0 = arith.constant 0 : index
    %c0_1 = arith.constant 0 : index
    %3 = vector.load %arg1[%c0, %c0_1] : memref<16x128xf32, #tpu.memory_space<vmem>>, vector<16x128xf32>
    %c0_2 = arith.constant 0 : index
    %c0_3 = arith.constant 0 : index
    %4 = vector.load %arg2[%c0_2, %c0_3] : memref<16x128xf32, #tpu.memory_space<vmem>>, vector<16x128xf32>
    %5 = arith.subf %3, %4 : vector<16x128xf32>
    %c0_4 = arith.constant 0 : index
    %6 = memref.load %arg3[%c0_4] : memref<1xf32, #tpu.memory_space<smem>>
    %7 = arith.mulf %5, %5 : vector<16x128xf32>
    %8 = vector.shape_cast %7 : vector<16x128xf32> to vector<1x16x128xf32>
    %cst = arith.constant dense<0.000000e+00> : vector<1xf32>
    %9 = vector.multi_reduction <add>, %8, %cst [1, 2] : vector<1x16x128xf32> to vector<1xf32>
    %10 = vector.shape_cast %9 : vector<1xf32> to vector<1x1x1xf32>
    %11 = vector.extract %10[0, 0, 0] : f32 from vector<1x1x1xf32>
    %12 = arith.addf %6, %11 : f32
    %c0_5 = arith.constant 0 : index
    %13 = memref.load %arg3[%c0_5] : memref<1xf32, #tpu.memory_space<smem>>
    memref.store %12, %arg3[%c0_5] : memref<1xf32, #tpu.memory_space<smem>>
    return
  }
  func.func @transform_0(%arg0: i32) -> (i32, i32) {
    %c0_i32 = arith.constant 0 : i32
    %c0_i32_0 = arith.constant 0 : i32
    return %arg0, %c0_i32 : i32, i32
  }
  func.func @transform_1(%arg0: i32) -> (i32, i32) {
    %c0_i32 = arith.constant 0 : i32
    %c0_i32_0 = arith.constant 0 : i32
    return %arg0, %c0_i32 : i32, i32
  }
  func.func @transform_2(%arg0: i32) -> i32 {
    %c0_i32 = arith.constant 0 : i32
    %c0_i32_0 = arith.constant 0 : i32
    return %c0_i32 : i32
  }
}

</mosaic_0001>

<llo_original>
// kernel: tpu_custom_call.1
$region0: #{tpu_custom_call.1}
  #allocation0 [shape = 'u32[]', space=smem, size = 0x4, offset = 0x4, fixed_abs, tag = 'smem constant byte address 0x4 - core index']
  #allocation1 [shape = 'u32[72,128]{1,0:T(1,128)}', space=vmem, size = 0x9000, scoped, tag = 'internal scratch']
  %s0 = inlined_call_operand.hbm [shape: f32[16,128], index: 0, kind: input, shape index: {}]
  %s1 = inlined_call_operand.hbm [shape: f32[16,128], index: 1, kind: input, shape index: {}]
  %s2 = inlined_call_operand.hbm [shape: f32[1], index: 2, kind: output, shape index: {}]
  %s3 = sld [smem:[#allocation0]]
  $region30: #{tpu_custom_call.1} parent=0
    _
  %s5 = ssub.s32 1, %s3
  %s6 = scalar_select 0, %s5, %s3
  $region1: #{tpu_custom_call.1} parent=0
    #allocation2 [shape = 'u8[8192]{0}', space=vmem, size = 0x2000, scoped, tag = 'input window, operand 0, single buffered']
    #allocation3 [shape = 's32[1]{0}', space=sflag, size = 0x4, scoped, tag = 'scoped memory for tpu_custom_call.1']
    #allocation4 [shape = 's32[1]{0}', space=sflag, size = 0x4, scoped, tag = 'scoped memory for tpu_custom_call.1']
    #allocation5 [shape = 'u8[8192]{0}', space=vmem, size = 0x2000, scoped, tag = 'input window, operand 1, single buffered']
    #allocation6 [shape = 's32[1]{0}', space=sflag, size = 0x4, scoped, tag = 'scoped memory for tpu_custom_call.1']
    #allocation7 [shape = 'u8[512]{0}', space=smem, size = 0x200, scoped, tag = 'output window, operand 0, single buffered']
    %7 = vsyncpa [#allocation3], 0
    %8 = vsyncpa [#allocation6], 0
    %9 = vsyncpa [#allocation4], 0
    // Predicated region
    $region2: #{tpu_custom_call.1} parent=1 // pred_check
      _
    $region3: #{tpu_custom_call.1} parent=1 // pred_check_branch
      %11 = sbr.rel (0) target = $region5
    $region4: #{tpu_custom_call.1} parent=1 // pred_region
      %13 = vsyncadd [#allocation3], 0
      %s14 = sshll.u32 %s0, 4
      %s15 = int_to_ptr.hbm [resolvable:$true] %s14
      %s16 = sshll.u32 [#allocation2], 4
      %s17 = int_to_ptr.vmem [resolvable:$true] %s16
      %22 = dma.hbm_to_vmem [thread:$0]  %s15, 256, %s17, [#allocation3], 128, 128, 8
    $region5: #{tpu_custom_call.1} parent=1 // pred_fallthru
      _
    // Predicated region
    $region6: #{tpu_custom_call.1} parent=1 // pred_check
      _
    $region7: #{tpu_custom_call.1} parent=1 // pred_check_branch
      %24 = sbr.rel (0) target = $region9
    $region8: #{tpu_custom_call.1} parent=1 // pred_region
      %26 = vsyncadd [#allocation6], 0
      %s27 = sshll.u32 %s1, 4
      %s28 = int_to_ptr.hbm [resolvable:$true] %s27
      %s29 = sshll.u32 [#allocation5], 4
      %s30 = int_to_ptr.vmem [resolvable:$true] %s29
      %35 = dma.hbm_to_vmem [thread:$0]  %s28, 256, %s30, [#allocation6], 128, 128, 8
    $region9: #{tpu_custom_call.1} parent=1 // pred_fallthru
      _
    // Predicated region
    $region10: #{tpu_custom_call.1} parent=1 // pred_check
      _
    $region11: #{tpu_custom_call.1} parent=1 // pred_check_branch
      %37 = sbr.rel (0) target = $region13
    $region12: #{tpu_custom_call.1} parent=1 // pred_region
      %39 = dma.done [#allocation3], 256
    $region13: #{tpu_custom_call.1} parent=1 // pred_fallthru
      _
    // Predicated region
    $region14: #{tpu_custom_call.1} parent=1 // pred_check
      _
    $region15: #{tpu_custom_call.1} parent=1 // pred_check_branch
      %41 = sbr.rel (0) target = $region17
    $region16: #{tpu_custom_call.1} parent=1 // pred_region
      %43 = dma.done [#allocation6], 256
    $region17: #{tpu_custom_call.1} parent=1 // pred_fallthru
      _
    %p44 = scmp.eq.s32.totalorder 0, 0
    // Predicated region
    $region18: #{tpu_custom_call.1} parent=1 // pred_check
      %p45 = pneg %p44
    $region19: #{tpu_custom_call.1} parent=1 // pred_check_branch
      %47 = sbr.rel (%p45) target = $region21
    $region20: #{tpu_custom_call.1} parent=1 // pred_region
      %s48 = scalar_lea.smem [#allocation7], 0
      %49 = sst [smem:[%s48]] 0.0
    $region21: #{tpu_custom_call.1} parent=1 // pred_fallthru
      _
    %v50 = vld [vmem:[#allocation2] sm:$0xff]
    %v51 = vld [vmem:[#allocation2 + $0x8] sm:$0xff]
    %v52 = vld [vmem:[#allocation5] sm:$0xff]
    %v53 = vld [vmem:[#allocation5 + $0x8] sm:$0xff]
    %v54 = vsub.f32 %v50, %v52
    %v55 = vsub.f32 %v51, %v53
    %s56 = sld [smem:[#allocation7]]
    %v57 = vmul.f32 %v54, %v54
    %v58 = vmul.f32 %v55, %v55
    %v59 = vadd.f32 %v57, %v58
    %60 = vadd.xlane.f32.xlu0 %v59
    %v61 = vpop.xlane.xlu0 %60
    %v62 = vrot.slane %v61, 4
    %v63 = vadd.f32 %v61, %v62
    %v64 = vrot.slane %v63, 2
    %v65 = vadd.f32 %v63, %v64
    %v66 = vrot.slane %v65, 1
    %v67 = vadd.f32 %v65, %v66
    %s68 = vtos %v67
    %s69 = sadd.f32 %s56, %s68
    %s70 = scalar_lea.smem [#allocation7], 0
    %71 = sst [smem:[%s70]] %s69
    // Predicated region
    $region22: #{tpu_custom_call.1} parent=1 // pred_check
      _
    $region23: #{tpu_custom_call.1} parent=1 // pred_check_branch
      %73 = sbr.rel (0) target = $region25
    $region24: #{tpu_custom_call.1} parent=1 // pred_region
      %75 = vsyncadd [#allocation4], 0
      %s77 = sshll.u32 %s2, 4
      %s78 = int_to_ptr.hbm [resolvable:$true] %s77
      %80 = dma.smem_to_hbm [#allocation7], 16, %s78, [#allocation4]
    $region25: #{tpu_custom_call.1} parent=1 // pred_fallthru
      _
    // Predicated region
    $region26: #{tpu_custom_call.1} parent=1 // pred_check
      _
    $region27: #{tpu_custom_call.1} parent=1 // pred_check_branch
      %82 = sbr.rel (0) target = $region29
    $region28: #{tpu_custom_call.1} parent=1 // pred_region
      %84 = dma.done [#allocation4], 16
    $region29: #{tpu_custom_call.1} parent=1 // pred_fallthru
      _
    %85 = sfence
    %86 = vsyncpa [#allocation3], 1
    %87 = vsyncpa [#allocation6], 1
    %88 = vsyncpa [#allocation4], 1

</llo_original>
